<compile_context>
chip_gen: v7x
topology: tpu7x:2x2x1
jax: 0.10.0
libtpu: 0.0.40
codegen_flags: <defaults>
</compile_context>

<pallas_src>
import functools

import jax
import jax.numpy as jnp
from jax import lax
from jax.experimental import pallas as pl
from jax.experimental.pallas import tpu as pltpu


def _lsce_kernel(preds_ref, tgt_ref, sum_ref, nll_ref, *, n_rows, tm):
    """Per-block partial sums of -sum_c logp and -logp[target] (logp never materialized)."""
    i = pl.program_id(0)

    x = preds_ref[...].astype(jnp.float32)                     # (tm, C)
    C = x.shape[-1]

    # Numerically stable row-wise logsumexp; exp/log ride the EUP slot.
    m = jnp.max(x, axis=-1, keepdims=True)                     # (tm, 1)
    sumexp = jnp.sum(jnp.exp(x - m), axis=-1, keepdims=True)   # (tm, 1)
    logz = m + jnp.log(sumexp)                                 # logsumexp per row, (tm, 1)

    sum_x = jnp.sum(x, axis=-1, keepdims=True)                 # (tm, 1)
    neg_row_sum = C * logz - sum_x                             # -sum_c log_softmax(x)_c

    # x[target] via masked sum (no f32 one-hot, no extra vmul on logp).
    col = lax.broadcasted_iota(jnp.int32, x.shape, 1)          # (tm, C)
    tgt_x = jnp.sum(jnp.where(col == tgt_ref[...], x, 0.0),
                    axis=-1, keepdims=True)                    # (tm, 1)
    neg_tgt = logz - tgt_x                                     # -log_softmax(x)[target]

    # Mask rows past N (last partial tile reads padded/garbage data).
    rows = i * tm + lax.broadcasted_iota(jnp.int32, (tm, 1), 0)
    valid = rows < n_rows
    neg_row_sum = jnp.where(valid, neg_row_sum, 0.0)
    neg_tgt = jnp.where(valid, neg_tgt, 0.0)

    # Per-block partial sums, splat into a lane-aligned (1, 8, 128) output block.
    sum_ref[...] = jnp.full(sum_ref.shape, jnp.sum(neg_row_sum), jnp.float32)
    nll_ref[...] = jnp.full(nll_ref.shape, jnp.sum(neg_tgt), jnp.float32)


def _round_up(x, m):
    return ((x + m - 1) // m) * m


def _auto_tile_rows(n_rows, n_classes, itemsize, block_budget_bytes=8 * 1024 * 1024):
    """Pick the row tile so the double-buffered (tm, C) input block is ~budget bytes."""
    tm = block_budget_bytes // max(1, 2 * n_classes * itemsize)
    tm = (tm // 8) * 8
    tm = max(8, min(1024, tm))
    tm = min(tm, _round_up(n_rows, 8))      # never larger than the (padded) row count
    return tm


@functools.partial(jax.jit, static_argnames=("epsilon", "reduction", "tm"))
def label_smoothing_cross_entropy(preds, target, epsilon=0.2, reduction="mean", tm=None):
    N, C = preds.shape
    if tm is None:
        tm = _auto_tile_rows(N, C, preds.dtype.itemsize)
    num_blocks = pl.cdiv(N, tm)
    tgt2 = target.astype(jnp.int32).reshape(N, 1)

    kernel = functools.partial(_lsce_kernel, n_rows=N, tm=tm)

    partial_sum, partial_nll = pl.pallas_call(
        kernel,
        out_shape=(
            jax.ShapeDtypeStruct((num_blocks, 8, 128), jnp.float32),
            jax.ShapeDtypeStruct((num_blocks, 8, 128), jnp.float32),
        ),
        grid_spec=pltpu.PrefetchScalarGridSpec(
            num_scalar_prefetch=0,
            grid=(num_blocks,),
            in_specs=[
                pl.BlockSpec((tm, C), lambda i: (i, 0)),
                pl.BlockSpec((tm, 1), lambda i: (i, 0)),
            ],
            out_specs=(
                pl.BlockSpec((1, 8, 128), lambda i: (i, 0, 0)),
                pl.BlockSpec((1, 8, 128), lambda i: (i, 0, 0)),
            ),
        ),
        compiler_params=pltpu.CompilerParams(
            dimension_semantics=("parallel",),          # no carried state -> shard across TCs
            vmem_limit_bytes=32 * 1024 * 1024,          # safe on v5e/v6e/v7x, above v5e default
        ),
    )(preds, tgt2)

    # Tiny final reduction + epsilon blend in plain JAX.
    sum_neg = jnp.sum(partial_sum[:, 0, 0])
    nll_sum = jnp.sum(partial_nll[:, 0, 0])

    if reduction == "mean":
        loss = sum_neg / N
        nll = nll_sum / N
    elif reduction == "sum":
        loss = sum_neg
        nll = nll_sum
    else:
        raise NotImplementedError("only 'mean' and 'sum' reductions are implemented")

    return epsilon * (loss / C) + (1.0 - epsilon) * nll


def _reference(preds, target, epsilon=0.2):
    logp = jax.nn.log_softmax(preds.astype(jnp.float32), axis=-1)
    n = preds.shape[-1]
    loss = jnp.mean(-jnp.sum(logp, axis=-1))
    nll = jnp.mean(-jnp.take_along_axis(logp, target[:, None].astype(jnp.int32), axis=-1)[:, 0])
    return epsilon * (loss / n) + (1.0 - epsilon) * nll


if __name__ == "__main__":
    key = jax.random.PRNGKey(0)
    k1, k2, k3, k4 = jax.random.split(key, 4)

    # Primary toy shape: 16 samples, 32 classes.
    N, C = 16, 32
    preds = jax.random.normal(k1, (N, C), dtype=jnp.float32)
    target = jax.random.randint(k2, (N,), 0, C, dtype=jnp.int32)
    out = label_smoothing_cross_entropy(preds, target, epsilon=0.2, reduction="mean")
    out = jax.block_until_ready(out)
    ref = _reference(preds, target, epsilon=0.2)
    assert jnp.allclose(out, ref, rtol=1e-5, atol=1e-5), (out, ref)

    # Ragged shape (N % tm != 0, C not a multiple of 128) exercises the masking path.
    N2, C2 = 37, 160
    preds2 = jax.random.normal(k3, (N2, C2), dtype=jnp.float32)
    target2 = jax.random.randint(k4, (N2,), 0, C2, dtype=jnp.int32)
    out2 = jax.block_until_ready(
        label_smoothing_cross_entropy(preds2, target2, epsilon=0.2, reduction="mean", tm=16)
    )
    ref2 = _reference(preds2, target2, epsilon=0.2)
    assert jnp.allclose(out2, ref2, rtol=1e-5, atol=1e-5), (out2, ref2)

    print("KERNEL_OK")
</pallas_src>

<mosaic_0001>
module attributes {stable_mosaic.version = 11 : i64} {
  func.func @_lsce_kernel(%arg0: i32, %arg1: memref<16x32xf32, #tpu.memory_space<vmem>>, %arg2: memref<16x1xi32, #tpu.memory_space<vmem>>, %arg3: memref<1x8x128xf32, #tpu.memory_space<vmem>>, %arg4: memref<1x8x128xf32, #tpu.memory_space<vmem>>) attributes {dimension_semantics = [#tpu.dimension_semantics<parallel>], iteration_bounds = array<i64: 1>, scalar_prefetch = 0 : i64, scratch_operands = 0 : i64, tpu.core_type = #tpu.core_type<tc>, window_params = [{transform_indices = @transform_0, window_bounds = array<i64: 16, 32>}, {transform_indices = @transform_1, window_bounds = array<i64: 16, 1>}, {transform_indices = @transform_2, window_bounds = array<i64: 1, 8, 128>}, {transform_indices = @transform_3, window_bounds = array<i64: 1, 8, 128>}]} {
    %c0 = arith.constant 0 : index
    %c0_0 = arith.constant 0 : index
    %0 = vector.load %arg1[%c0, %c0_0] : memref<16x32xf32, #tpu.memory_space<vmem>>, vector<16x32xf32>
    %cst = arith.constant dense<0xFF800000> : vector<16xf32>
    %1 = vector.multi_reduction <maximumf>, %0, %cst [1] : vector<16x32xf32> to vector<16xf32>
    %2 = vector.shape_cast %1 : vector<16xf32> to vector<16x1xf32>
    %3 = vector.broadcast %2 : vector<16x1xf32> to vector<16x32xf32>
    %4 = arith.subf %0, %3 : vector<16x32xf32>
    %5 = math.exp %4 : vector<16x32xf32>
    %cst_1 = arith.constant dense<0.000000e+00> : vector<16xf32>
    %6 = vector.multi_reduction <add>, %5, %cst_1 [1] : vector<16x32xf32> to vector<16xf32>
    %7 = vector.shape_cast %6 : vector<16xf32> to vector<16x1xf32>
    %8 = math.log %7 : vector<16x1xf32>
    %9 = arith.addf %2, %8 : vector<16x1xf32>
    %cst_2 = arith.constant dense<0.000000e+00> : vector<16xf32>
    %10 = vector.multi_reduction <add>, %0, %cst_2 [1] : vector<16x32xf32> to vector<16xf32>
    %11 = vector.shape_cast %10 : vector<16xf32> to vector<16x1xf32>
    %cst_3 = arith.constant 3.200000e+01 : f32
    %12 = vector.broadcast %cst_3 : f32 to vector<16x1xf32>
    %13 = arith.mulf %12, %9 : vector<16x1xf32>
    %14 = arith.subf %13, %11 : vector<16x1xf32>
    %15 = tpu.iota {dimensions = array<i32: 1>} : vector<16x32xi32>
    %c0_4 = arith.constant 0 : index
    %c0_5 = arith.constant 0 : index
    %16 = vector.load %arg2[%c0_4, %c0_5] : memref<16x1xi32, #tpu.memory_space<vmem>>, vector<16x1xi32>
    %17 = vector.broadcast %16 : vector<16x1xi32> to vector<16x32xi32>
    %18 = arith.cmpi eq, %15, %17 : vector<16x32xi32>
    %cst_6 = arith.constant 0.000000e+00 : f32
    %19 = vector.broadcast %cst_6 : f32 to vector<16x32xf32>
    %20 = arith.select %18, %0, %19 : vector<16x32xi1>, vector<16x32xf32>
    %cst_7 = arith.constant dense<0.000000e+00> : vector<16xf32>
    %21 = vector.multi_reduction <add>, %20, %cst_7 [1] : vector<16x32xf32> to vector<16xf32>
    %22 = vector.shape_cast %21 : vector<16xf32> to vector<16x1xf32>
    %23 = arith.subf %9, %22 : vector<16x1xf32>
    %c16_i32 = arith.constant 16 : i32
    %24 = arith.muli %arg0, %c16_i32 : i32
    %25 = tpu.iota {dimensions = array<i32: 0>} : vector<16x1xi32>
    %26 = vector.broadcast %24 : i32 to vector<16x1xi32>
    %27 = arith.addi %26, %25 : vector<16x1xi32>
    %c16_i32_8 = arith.constant 16 : i32
    %28 = vector.broadcast %c16_i32_8 : i32 to vector<16x1xi32>
    %29 = arith.cmpi slt, %27, %28 : vector<16x1xi32>
    %cst_9 = arith.constant 0.000000e+00 : f32
    %30 = vector.broadcast %cst_9 : f32 to vector<16x1xf32>
    %31 = arith.select %29, %14, %30 : vector<16x1xi1>, vector<16x1xf32>
    %cst_10 = arith.constant 0.000000e+00 : f32
    %32 = vector.broadcast %cst_10 : f32 to vector<16x1xf32>
    %33 = arith.select %29, %23, %32 : vector<16x1xi1>, vector<16x1xf32>
    %34 = vector.shape_cast %31 : vector<16x1xf32> to vector<1x16x1xf32>
    %cst_11 = arith.constant dense<0.000000e+00> : vector<1xf32>
    %35 = vector.multi_reduction <add>, %34, %cst_11 [1, 2] : vector<1x16x1xf32> to vector<1xf32>
    %36 = vector.shape_cast %35 : vector<1xf32> to vector<1x1x1xf32>
    %37 = vector.extract %36[0, 0, 0] : f32 from vector<1x1x1xf32>
    %38 = vector.broadcast %37 : f32 to vector<1x8x128xf32>
    %c0_12 = arith.constant 0 : index
    %c0_13 = arith.constant 0 : index
    %c0_14 = arith.constant 0 : index
    %39 = vector.load %arg3[%c0_12, %c0_13, %c0_14] : memref<1x8x128xf32, #tpu.memory_space<vmem>>, vector<1x8x128xf32>
    tpu.vector_store %arg3[%c0_12, %c0_13, %c0_14], %38 {strides = array<i32>} : memref<1x8x128xf32, #tpu.memory_space<vmem>>, vector<1x8x128xf32>,
    %40 = vector.shape_cast %33 : vector<16x1xf32> to vector<1x16x1xf32>
    %cst_15 = arith.constant dense<0.000000e+00> : vector<1xf32>
    %41 = vector.multi_reduction <add>, %40, %cst_15 [1, 2] : vector<1x16x1xf32> to vector<1xf32>
    %42 = vector.shape_cast %41 : vector<1xf32> to vector<1x1x1xf32>
    %43 = vector.extract %42[0, 0, 0] : f32 from vector<1x1x1xf32>
    %44 = vector.broadcast %43 : f32 to vector<1x8x128xf32>
    %c0_16 = arith.constant 0 : index
    %c0_17 = arith.constant 0 : index
    %c0_18 = arith.constant 0 : index
    %45 = vector.load %arg4[%c0_16, %c0_17, %c0_18] : memref<1x8x128xf32, #tpu.memory_space<vmem>>, vector<1x8x128xf32>
    tpu.vector_store %arg4[%c0_16, %c0_17, %c0_18], %44 {strides = array<i32>} : memref<1x8x128xf32, #tpu.memory_space<vmem>>, vector<1x8x128xf32>,
    return
  }
  func.func @transform_0(%arg0: i32) -> (i32, i32) {
    %c0_i32 = arith.constant 0 : i32
    %c0_i32_0 = arith.constant 0 : i32
    return %arg0, %c0_i32 : i32, i32
  }
  func.func @transform_1(%arg0: i32) -> (i32, i32) {
    %c0_i32 = arith.constant 0 : i32
    %c0_i32_0 = arith.constant 0 : i32
    return %arg0, %c0_i32 : i32, i32
  }
  func.func @transform_2(%arg0: i32) -> (i32, i32, i32) {
    %c0_i32 = arith.constant 0 : i32
    %c0_i32_0 = arith.constant 0 : i32
    %c0_i32_1 = arith.constant 0 : i32
    return %arg0, %c0_i32, %c0_i32_0 : i32, i32, i32
  }
  func.func @transform_3(%arg0: i32) -> (i32, i32, i32) {
    %c0_i32 = arith.constant 0 : i32
    %c0_i32_0 = arith.constant 0 : i32
    %c0_i32_1 = arith.constant 0 : i32
    return %arg0, %c0_i32, %c0_i32_0 : i32, i32, i32
  }
}

</mosaic_0001>

<llo_original>
// kernel: label_smoothing_cross_entropy.1
$region0: #{label_smoothing_cross_entropy.1}
  #allocation0 [shape = 'u32[]', space=smem, size = 0x4, offset = 0x4, fixed_abs, tag = 'smem constant byte address 0x4 - core index']
  #allocation1 [shape = 'u32[144,128]{1,0:T(1,128)}', space=vmem, size = 0x12000, scoped, tag = 'internal scratch']
  %s0 = inlined_call_operand.vmem [shape: f32[16,32], index: 0, kind: input, shape index: {}]
  %s1 = inlined_call_operand.vmem [shape: s32[16,1], index: 1, kind: input, shape index: {}]
  %s2 = inlined_call_operand.vmem [shape: f32[1,8,128], index: 2, kind: output, shape index: {0}]
  %s3 = inlined_call_operand.vmem [shape: f32[1,8,128], index: 3, kind: output, shape index: {1}]
  %4 = xla_tuple %s2, %s3
  %s5 = sld [smem:[#allocation0]]
  $region26: #{label_smoothing_cross_entropy.1} parent=0
    _
  %s7 = ssub.s32 1, %s5
  %s8 = scalar_select 0, %s7, %s5
  // Predicated region
  $region2: #{label_smoothing_cross_entropy.1} parent=0 // pred_check
    _
  $region3: #{label_smoothing_cross_entropy.1} parent=0 // pred_check_branch
    %10 = sbr.rel (0) target = $region5
  $region4: #{label_smoothing_cross_entropy.1} parent=0 // pred_region
    _
  $region5: #{label_smoothing_cross_entropy.1} parent=0 // pred_fallthru
    _
  // Predicated region
  $region6: #{label_smoothing_cross_entropy.1} parent=0 // pred_check
    _
  $region7: #{label_smoothing_cross_entropy.1} parent=0 // pred_check_branch
    %12 = sbr.rel (0) target = $region9
  $region8: #{label_smoothing_cross_entropy.1} parent=0 // pred_region
    _
  $region9: #{label_smoothing_cross_entropy.1} parent=0 // pred_fallthru
    _
  %v13 = vld [vmem:[%s0] sm:$0xff]
  %v14 = vld [vmem:[%s0 + $0x8] sm:$0xff]
  %vm15 = vcmask 261120
  %v16 = vsel %vm15, %v13, -inf
  %17 = vmax.xlane.f32.xlu0 %v16
  %v18 = vpop.xlane.xlu0 %17
  %v19 = vsel %vm15, %v14, -inf
  %20 = vmax.xlane.f32.xlu0 %v19
  %v21 = vpop.xlane.xlu0 %20
  %v22 = vsub.f32 %v13, %v18
  %v23 = vsub.f32 %v14, %v21
  %v24 = vmul.f32 %v22, 1.442695
  %v25 = vpow.pop %v24
  %v26 = vmul.f32 %v23, 1.442695
  %v27 = vpow.pop %v26
  %v28 = vsel %vm15, %v25, 0.0
  %29 = vadd.xlane.f32.xlu0 %v28
  %v30 = vpop.xlane.xlu0 %29
  %v31 = vsel %vm15, %v27, 0.0
  %32 = vadd.xlane.f32.xlu0 %v31
  %v33 = vpop.xlane.xlu0 %32
  %v34 = vlog2.pop %v30
  %v35 = vmul.f32 %v34, 0.6931472
  %v36 = vlog2.pop %v33
  %v37 = vmul.f32 %v36, 0.6931472
  %v38 = vadd.f32 %v18, %v35
  %v39 = vadd.f32 %v21, %v37
  %v40 = vsel %vm15, %v13, 0.0
  %41 = vadd.xlane.f32.xlu0 %v40
  %v42 = vpop.xlane.xlu0 %41
  %v43 = vsel %vm15, %v14, 0.0
  %44 = vadd.xlane.f32.xlu0 %v43
  %v45 = vpop.xlane.xlu0 %44
  %v46 = vmul.f32 %v38, 32.0
  %v47 = vmul.f32 %v39, 32.0
  %v48 = vsub.f32 %v46, %v42
  %v49 = vsub.f32 %v47, %v45
  %v50 = vlaneseq
  %v51 = vand.u32 %v50, 127
  %v52 = vld [vmem:[%s1] sm:$0xff]
  %v53 = vld [vmem:[%s1 + $0x8] sm:$0xff]
  %54 = vset.pattern.permute.xlu0 0
  %55 = vperm.xlu0 %54, %v52
  %v56 = vpop.permute.xlu0 %55
  %57 = vset.pattern.permute.xlu0 0
  %58 = vperm.xlu0 %57, %v53
  %v59 = vpop.permute.xlu0 %58
  %vm60 = vcmp.eq.s32.totalorder %v51, %v56
  %vm61 = vcmp.eq.s32.totalorder %v51, %v59
  %v62 = vsel %vm60, %v13, 0.0
  %v63 = vsel %vm61, %v14, 0.0
  %v64 = vsel %vm15, %v62, 0.0
  %65 = vadd.xlane.f32.xlu0 %v64
  %v66 = vpop.xlane.xlu0 %65
  %v67 = vsel %vm15, %v63, 0.0
  %68 = vadd.xlane.f32.xlu0 %v67
  %v69 = vpop.xlane.xlu0 %68
  %v70 = vsub.f32 %v38, %v66
  %v71 = vsub.f32 %v39, %v69
  %s72 = smul.u32 0, 16
  %v73 = vlaneseq
  %v74 = vshrl.u32 %v73, 7
  %v75 = vadd.s32 %v74, 8
  %v76 = vstv %s72
  %v77 = vadd.s32 %v76, %v74
  %v78 = vadd.s32 %v76, %v75
  %vm79 = vcmp.lt.s32.totalorder %v77, 16
  %vm80 = vcmp.lt.s32.totalorder %v78, 16
  %v81 = vsel %vm79, %v48, 0.0
  %v82 = vsel %vm80, %v49, 0.0
  %v83 = vsel %vm79, %v70, 0.0
  %v84 = vsel %vm80, %v71, 0.0
  %vm85 = vcmask 7168
  %v86 = vsel %vm85, %v81, 0.0
  %v87 = vsel %vm85, %v82, 0.0
  %v88 = vadd.f32 %v86, %v87
  %89 = vadd.xlane.f32.xlu0 %v88
  %v90 = vpop.xlane.xlu0 %89
  %v91 = vrot.slane %v90, 4
  %v92 = vadd.f32 %v90, %v91
  %v93 = vrot.slane %v92, 2
  %v94 = vadd.f32 %v92, %v93
  %v95 = vrot.slane %v94, 1
  %v96 = vadd.f32 %v94, %v95
  %s97 = vtos %v96
  %v98 = vstv %s97
  %99 = vst [vmem:[%s2] sm:$0xff] %v98
  %v100 = vsel %vm85, %v83, 0.0
  %v101 = vsel %vm85, %v84, 0.0
  %v102 = vadd.f32 %v100, %v101
  %103 = vadd.xlane.f32.xlu0 %v102
  %v104 = vpop.xlane.xlu0 %103
  %v105 = vrot.slane %v104, 4
  %v106 = vadd.f32 %v104, %v105
  %v107 = vrot.slane %v106, 2
  %v108 = vadd.f32 %v106, %v107
  %v109 = vrot.slane %v108, 1
  %v110 = vadd.f32 %v108, %v109
  %s111 = vtos %v110
  %v112 = vstv %s111
  %113 = vst [vmem:[%s3] sm:$0xff] %v112
  // Predicated region
  $region10: #{label_smoothing_cross_entropy.1} parent=0 // pred_check
    _
  $region11: #{label_smoothing_cross_entropy.1} parent=0 // pred_check_branch
    %115 = sbr.rel (0) target = $region13
  $region12: #{label_smoothing_cross_entropy.1} parent=0 // pred_region
    _
  $region13: #{label_smoothing_cross_entropy.1} parent=0 // pred_fallthru
    _
  // Predicated region
  $region14: #{label_smoothing_cross_entropy.1} parent=0 // pred_check
    _
  $region15: #{label_smoothing_cross_entropy.1} parent=0 // pred_check_branch
    %117 = sbr.rel (0) target = $region17
  $region16: #{label_smoothing_cross_entropy.1} parent=0 // pred_region
    _
  $region17: #{label_smoothing_cross_entropy.1} parent=0 // pred_fallthru
    _
  // Predicated region
  $region18: #{label_smoothing_cross_entropy.1} parent=0 // pred_check
    _
  $region19: #{label_smoothing_cross_entropy.1} parent=0 // pred_check_branch
    %119 = sbr.rel (0) target = $region21
  $region20: #{label_smoothing_cross_entropy.1} parent=0 // pred_region
    _
  $region21: #{label_smoothing_cross_entropy.1} parent=0 // pred_fallthru
    _
  // Predicated region
  $region22: #{label_smoothing_cross_entropy.1} parent=0 // pred_check
    _
  $region23: #{label_smoothing_cross_entropy.1} parent=0 // pred_check_branch
    %121 = sbr.rel (0) target = $region25
  $region24: #{label_smoothing_cross_entropy.1} parent=0 // pred_region
    _
  $region25: #{label_smoothing_cross_entropy.1} parent=0 // pred_fallthru
    _

</llo_original>
